<compile_context>
chip_gen: v7x
topology: tpu7x:2x2x1
jax: 0.10.0
libtpu: 0.0.40
codegen_flags: <defaults>
</compile_context>

<pallas_src>
import math

import jax
import jax.numpy as jnp
from jax.experimental import pallas as pl
from jax.experimental.pallas import tpu as pltpu


def _round_up(x, m):
    return ((x + m - 1) // m) * m


# ---------------------------------------------------------------------------
# Kernel
# ---------------------------------------------------------------------------
def _qfunction_kernel(x_ref,                       # (TILE_B, P)  bf16  [state|action|0]
                      w1_ref, b1_ref,              # (P, H) bf16, (1, H) f32
                      w2_ref, b2_ref,              # (H, H) bf16, (1, H) f32
                      w3s_ref, w3a_ref, b3_ref,    # (H, H) bf16, (P, H) bf16, (1, H) f32
                      w4_ref, b4_ref,              # (1, H) f32,  (1, 1) f32
                      out_ref):                    # (1, TILE_B) f32  (lane-dense)
    x = x_ref[...]                                  # bf16 packed input

    # Layer 1: Linear(obs -> H) + ReLU  (state rows of the packed input)
    h = jnp.dot(x, w1_ref[...], preferred_element_type=jnp.float32) + b1_ref[...]
    h = jnp.maximum(h, 0.0)

    # Layer 2: Linear(H -> H) + ReLU
    h = jnp.dot(h.astype(w2_ref.dtype), w2_ref[...],
                preferred_element_type=jnp.float32) + b2_ref[...]
    h = jnp.maximum(h, 0.0)

    # Layer 3: Linear(H + action -> H) + ReLU with the concat fused:
    #   cat([h, action]) @ W3 == h @ W3_s + packed_x @ W3_a_full
    h = (jnp.dot(h.astype(w3s_ref.dtype), w3s_ref[...],
                 preferred_element_type=jnp.float32)
         + jnp.dot(x, w3a_ref[...], preferred_element_type=jnp.float32)
         + b3_ref[...])
    h = jnp.maximum(h, 0.0)

    # Output head Linear(H -> 1): VPU multiply + XLU lane-reduce instead of an
    # N=1 MXU matmul; store lane-dense with batch on the lane axis.
    q = jnp.sum(h * w4_ref[...], axis=-1)           # (TILE_B,)  f32
    out_ref[...] = q[None, :] + b4_ref[...]          # (1, TILE_B)


# ---------------------------------------------------------------------------
# Parameter construction (PyTorch-style init, then pad/pack for the kernel)
# ---------------------------------------------------------------------------
def init_qfunction_params(key, obs_dim, action_dim, h_dim=100,
                          compute_dtype=jnp.bfloat16):
    """Returns (kernel_params, raw_params).

    raw_params hold the original f32 (in, out)-layout weights (for reference);
    kernel_params hold zero-padded / split / dtype-cast tensors for the kernel.
    """
    def linear(k, fan_in, fan_out):
        kw, kb = jax.random.split(k)
        bound = 1.0 / math.sqrt(fan_in)
        w = jax.random.uniform(kw, (fan_in, fan_out), jnp.float32, -bound, bound)
        b = jax.random.uniform(kb, (fan_out,), jnp.float32, -bound, bound)
        return w, b

    k1, k2, k3, k4 = jax.random.split(key, 4)
    w1, b1 = linear(k1, obs_dim, h_dim)
    w2, b2 = linear(k2, h_dim, h_dim)
    w3, b3 = linear(k3, h_dim + action_dim, h_dim)     # acts on cat([h, action])
    w4, b4 = linear(k4, h_dim, 1)

    raw = dict(w1=w1, b1=b1, w2=w2, b2=b2, w3=w3, b3=b3, w4=w4, b4=b4)

    H = _round_up(h_dim, 128)                 # padded hidden dim
    P = _round_up(obs_dim + action_dim, 128)  # padded packed-input dim

    # Zero-pad to MXU/vreg-friendly shapes (padded hidden lanes stay exactly 0
    # through ReLU, so results are bit-for-bit the unpadded math in f32).
    w1f = jnp.zeros((P, H), jnp.float32).at[:obs_dim, :h_dim].set(w1)
    w2f = jnp.zeros((H, H), jnp.float32).at[:h_dim, :h_dim].set(w2)
    w3s = jnp.zeros((H, H), jnp.float32).at[:h_dim, :h_dim].set(w3[:h_dim])
    # Action half of W3, scattered into the packed-input row positions.
    w3a = jnp.zeros((P, H), jnp.float32).at[
        obs_dim:obs_dim + action_dim, :h_dim].set(w3[h_dim:])

    b1f = jnp.zeros((1, H), jnp.float32).at[0, :h_dim].set(b1)
    b2f = jnp.zeros((1, H), jnp.float32).at[0, :h_dim].set(b2)
    b3f = jnp.zeros((1, H), jnp.float32).at[0, :h_dim].set(b3)
    w4f = jnp.zeros((1, H), jnp.float32).at[0, :h_dim].set(w4[:, 0])
    b4f = b4.reshape(1, 1)

    kernel_params = dict(
        # MXU operands in bf16 (f32 accumulate in-kernel); elementwise in f32.
        w1=w1f.astype(compute_dtype), b1=b1f,
        w2=w2f.astype(compute_dtype), b2=b2f,
        w3s=w3s.astype(compute_dtype), w3a=w3a.astype(compute_dtype), b3=b3f,
        w4=w4f, b4=b4f,
        obs_dim=obs_dim, action_dim=action_dim, h_dim=h_dim, H=H, P=P,
    )
    return kernel_params, raw


# ---------------------------------------------------------------------------
# Wrapper
# ---------------------------------------------------------------------------
def qfunction_forward(state, action, params, *, tile_b=512):
    """state: (B, obs_dim), action: (B, action_dim) -> (B,) f32."""
    assert tile_b % 128 == 0, "tile_b must be a multiple of 128 (lane-dense out)"
    B = state.shape[0]
    obs_dim = params["obs_dim"]
    action_dim = params["action_dim"]
    P, H = params["P"], params["H"]
    compute_dtype = params["w1"].dtype

    # Pack [state | action | 0-pad] into one lane-dense input, cast to the MXU
    # input dtype (halves HBM/VMEM traffic vs f32), single DMA per grid step.
    x = jnp.concatenate([state, action], axis=-1).astype(compute_dtype)

    # Batch tiling: one tile for small batches, 512-row tiles otherwise.
    if B <= tile_b:
        TILE_B = max(8, _round_up(B, 8))
    else:
        TILE_B = tile_b
    B_pad = _round_up(B, TILE_B)
    x = jnp.pad(x, ((0, B_pad - B), (0, P - x.shape[1])))

    n_tiles = B_pad // TILE_B

    def resident(shape):
        # Constant index_map: DMA'd once, stays VMEM-resident across the grid.
        return pl.BlockSpec(shape, lambda i: (0, 0))

    in_specs = [
        pl.BlockSpec((TILE_B, P), lambda i: (i, 0)),   # packed activations
        resident((P, H)), resident((1, H)),            # layer 1
        resident((H, H)), resident((1, H)),            # layer 2
        resident((H, H)), resident((P, H)), resident((1, H)),  # layer 3
        resident((1, H)), resident((1, 1)),            # head
    ]
    out_specs = pl.BlockSpec((1, TILE_B), lambda i: (0, i))

    weight_bytes = sum(int(params[k].size) * params[k].dtype.itemsize
                       for k in ("w1", "b1", "w2", "b2", "w3s", "w3a", "b3",
                                 "w4", "b4"))
    cost = pl.CostEstimate(
        flops=2 * B_pad * (2 * P * H + 2 * H * H + H),
        transcendentals=0,
        bytes_accessed=int(x.size) * x.dtype.itemsize + weight_bytes + B_pad * 4,
    )

    out = pl.pallas_call(
        _qfunction_kernel,
        out_shape=jax.ShapeDtypeStruct((1, B_pad), jnp.float32),
        grid=(n_tiles,),
        in_specs=in_specs,
        out_specs=out_specs,
        compiler_params=pltpu.CompilerParams(
            dimension_semantics=("parallel",),   # shard batch tiles across TCs
        ),
        cost_estimate=cost,
    )(x,
      params["w1"], params["b1"],
      params["w2"], params["b2"],
      params["w3s"], params["w3a"], params["b3"],
      params["w4"], params["b4"])

    return out[0, :B]   # squeeze(-1) + drop batch padding


# ---------------------------------------------------------------------------
# Pure-JAX reference (exact PyTorch math, f32, unpadded weights)
# ---------------------------------------------------------------------------
def qfunction_reference(state, action, raw):
    h = jnp.maximum(state @ raw["w1"] + raw["b1"], 0.0)
    h = jnp.maximum(h @ raw["w2"] + raw["b2"], 0.0)
    cat = jnp.concatenate([h, action], axis=-1)
    h = jnp.maximum(cat @ raw["w3"] + raw["b3"], 0.0)
    return (h @ raw["w4"] + raw["b4"])[:, 0]


if __name__ == "__main__":
    B, obs_dim, action_dim, h_dim = 8, 32, 8, 32

    key = jax.random.PRNGKey(0)
    k_state, k_action, k_params = jax.random.split(key, 3)

    state = jax.random.normal(k_state, (B, obs_dim), dtype=jnp.float32)
    action = jax.random.normal(k_action, (B, action_dim), dtype=jnp.float32)
    params, raw = init_qfunction_params(k_params, obs_dim, action_dim, h_dim)

    q = qfunction_forward(state, action, params)
    q = jax.block_until_ready(q)

    q_ref = qfunction_reference(state, action, raw)
    assert q.shape == (B,), q.shape
    # bf16 matmul inputs (f32 accumulate) vs f32 reference -> relaxed tolerance.
    assert jnp.allclose(q, q_ref, atol=5e-2, rtol=5e-2), (q, q_ref)

    print("KERNEL_OK")
</pallas_src>

<mosaic_0001>
module attributes {stable_mosaic.version = 11 : i64} {
  func.func @_qfunction_kernel(%arg0: i32, %arg1: memref<8x128xbf16, #tpu.memory_space<vmem>>, %arg2: memref<128x128xbf16, #tpu.memory_space<vmem>>, %arg3: memref<1x128xf32, #tpu.memory_space<vmem>>, %arg4: memref<128x128xbf16, #tpu.memory_space<vmem>>, %arg5: memref<1x128xf32, #tpu.memory_space<vmem>>, %arg6: memref<128x128xbf16, #tpu.memory_space<vmem>>, %arg7: memref<128x128xbf16, #tpu.memory_space<vmem>>, %arg8: memref<1x128xf32, #tpu.memory_space<vmem>>, %arg9: memref<1x128xf32, #tpu.memory_space<vmem>>, %arg10: memref<1x1xf32, #tpu.memory_space<vmem>>, %arg11: memref<1x8xf32, #tpu.memory_space<vmem>>) attributes {dimension_semantics = [#tpu.dimension_semantics<parallel>], iteration_bounds = array<i64: 1>, scalar_prefetch = 0 : i64, scratch_operands = 0 : i64, tpu.core_type = #tpu.core_type<tc>, window_params = [{transform_indices = @transform_0, window_bounds = array<i64: 8, 128>}, {pipeline_mode = #tpu.pipeline_mode<synchronous>, transform_indices = @transform_1, window_bounds = array<i64: 128, 128>}, {pipeline_mode = #tpu.pipeline_mode<synchronous>, transform_indices = @transform_2, window_bounds = array<i64: 1, 128>}, {pipeline_mode = #tpu.pipeline_mode<synchronous>, transform_indices = @transform_3, window_bounds = array<i64: 128, 128>}, {pipeline_mode = #tpu.pipeline_mode<synchronous>, transform_indices = @transform_4, window_bounds = array<i64: 1, 128>}, {pipeline_mode = #tpu.pipeline_mode<synchronous>, transform_indices = @transform_5, window_bounds = array<i64: 128, 128>}, {pipeline_mode = #tpu.pipeline_mode<synchronous>, transform_indices = @transform_6, window_bounds = array<i64: 128, 128>}, {pipeline_mode = #tpu.pipeline_mode<synchronous>, transform_indices = @transform_7, window_bounds = array<i64: 1, 128>}, {pipeline_mode = #tpu.pipeline_mode<synchronous>, transform_indices = @transform_8, window_bounds = array<i64: 1, 128>}, {pipeline_mode = #tpu.pipeline_mode<synchronous>, transform_indices = @transform_9, window_bounds = array<i64: 1, 1>}, {transform_indices = @transform_10, window_bounds = array<i64: 1, 8>}]} {
    %c0 = arith.constant 0 : index
    %c0_0 = arith.constant 0 : index
    %0 = vector.load %arg1[%c0, %c0_0] : memref<8x128xbf16, #tpu.memory_space<vmem>>, vector<8x128xbf16>
    %c0_1 = arith.constant 0 : index
    %c0_2 = arith.constant 0 : index
    %1 = vector.load %arg2[%c0_1, %c0_2] : memref<128x128xbf16, #tpu.memory_space<vmem>>, vector<128x128xbf16>
    %cst = arith.constant dense<0.000000e+00> : vector<8x128xf32>
    %2 = tpu.matmul %0, %1, %cst {dimension_numbers = #tpu.dot_dimension_numbers<[1], [0], [0], [1], [0, 0, 1, 1], [], []>} : vector<8x128xbf16>, vector<128x128xbf16>, vector<8x128xf32> -> vector<8x128xf32>
    %c0_3 = arith.constant 0 : index
    %c0_4 = arith.constant 0 : index
    %3 = vector.load %arg3[%c0_3, %c0_4] : memref<1x128xf32, #tpu.memory_space<vmem>>, vector<1x128xf32>
    %4 = vector.broadcast %3 : vector<1x128xf32> to vector<8x128xf32>
    %5 = arith.addf %2, %4 : vector<8x128xf32>
    %cst_5 = arith.constant 0.000000e+00 : f32
    %6 = vector.broadcast %cst_5 : f32 to vector<8x128xf32>
    %7 = arith.maximumf %5, %6 : vector<8x128xf32>
    %8 = arith.truncf %7 : vector<8x128xf32> to vector<8x128xbf16>
    %c0_6 = arith.constant 0 : index
    %c0_7 = arith.constant 0 : index
    %9 = vector.load %arg4[%c0_6, %c0_7] : memref<128x128xbf16, #tpu.memory_space<vmem>>, vector<128x128xbf16>
    %cst_8 = arith.constant dense<0.000000e+00> : vector<8x128xf32>
    %10 = tpu.matmul %8, %9, %cst_8 {dimension_numbers = #tpu.dot_dimension_numbers<[1], [0], [0], [1], [0, 0, 1, 1], [], []>} : vector<8x128xbf16>, vector<128x128xbf16>, vector<8x128xf32> -> vector<8x128xf32>
    %c0_9 = arith.constant 0 : index
    %c0_10 = arith.constant 0 : index
    %11 = vector.load %arg5[%c0_9, %c0_10] : memref<1x128xf32, #tpu.memory_space<vmem>>, vector<1x128xf32>
    %12 = vector.broadcast %11 : vector<1x128xf32> to vector<8x128xf32>
    %13 = arith.addf %10, %12 : vector<8x128xf32>
    %cst_11 = arith.constant 0.000000e+00 : f32
    %14 = vector.broadcast %cst_11 : f32 to vector<8x128xf32>
    %15 = arith.maximumf %13, %14 : vector<8x128xf32>
    %16 = arith.truncf %15 : vector<8x128xf32> to vector<8x128xbf16>
    %c0_12 = arith.constant 0 : index
    %c0_13 = arith.constant 0 : index
    %17 = vector.load %arg6[%c0_12, %c0_13] : memref<128x128xbf16, #tpu.memory_space<vmem>>, vector<128x128xbf16>
    %cst_14 = arith.constant dense<0.000000e+00> : vector<8x128xf32>
    %18 = tpu.matmul %16, %17, %cst_14 {dimension_numbers = #tpu.dot_dimension_numbers<[1], [0], [0], [1], [0, 0, 1, 1], [], []>} : vector<8x128xbf16>, vector<128x128xbf16>, vector<8x128xf32> -> vector<8x128xf32>
    %c0_15 = arith.constant 0 : index
    %c0_16 = arith.constant 0 : index
    %19 = vector.load %arg7[%c0_15, %c0_16] : memref<128x128xbf16, #tpu.memory_space<vmem>>, vector<128x128xbf16>
    %cst_17 = arith.constant dense<0.000000e+00> : vector<8x128xf32>
    %20 = tpu.matmul %0, %19, %cst_17 {dimension_numbers = #tpu.dot_dimension_numbers<[1], [0], [0], [1], [0, 0, 1, 1], [], []>} : vector<8x128xbf16>, vector<128x128xbf16>, vector<8x128xf32> -> vector<8x128xf32>
    %21 = arith.addf %18, %20 : vector<8x128xf32>
    %c0_18 = arith.constant 0 : index
    %c0_19 = arith.constant 0 : index
    %22 = vector.load %arg8[%c0_18, %c0_19] : memref<1x128xf32, #tpu.memory_space<vmem>>, vector<1x128xf32>
    %23 = vector.broadcast %22 : vector<1x128xf32> to vector<8x128xf32>
    %24 = arith.addf %21, %23 : vector<8x128xf32>
    %cst_20 = arith.constant 0.000000e+00 : f32
    %25 = vector.broadcast %cst_20 : f32 to vector<8x128xf32>
    %26 = arith.maximumf %24, %25 : vector<8x128xf32>
    %c0_21 = arith.constant 0 : index
    %c0_22 = arith.constant 0 : index
    %27 = vector.load %arg9[%c0_21, %c0_22] : memref<1x128xf32, #tpu.memory_space<vmem>>, vector<1x128xf32>
    %28 = vector.broadcast %27 : vector<1x128xf32> to vector<8x128xf32>
    %29 = arith.mulf %26, %28 : vector<8x128xf32>
    %cst_23 = arith.constant dense<0.000000e+00> : vector<8xf32>
    %30 = vector.multi_reduction <add>, %29, %cst_23 [1] : vector<8x128xf32> to vector<8xf32>
    %31 = vector.shape_cast %30 : vector<8xf32> to vector<1x8xf32>
    %c0_24 = arith.constant 0 : index
    %c0_25 = arith.constant 0 : index
    %32 = vector.load %arg10[%c0_24, %c0_25] : memref<1x1xf32, #tpu.memory_space<vmem>>, vector<1x1xf32>
    %33 = vector.broadcast %32 : vector<1x1xf32> to vector<1x8xf32>
    %34 = arith.addf %31, %33 : vector<1x8xf32>
    %c0_26 = arith.constant 0 : index
    %c0_27 = arith.constant 0 : index
    %35 = vector.load %arg11[%c0_26, %c0_27] : memref<1x8xf32, #tpu.memory_space<vmem>>, vector<1x8xf32>
    tpu.vector_store %arg11[%c0_26, %c0_27], %34 {strides = array<i32>} : memref<1x8xf32, #tpu.memory_space<vmem>>, vector<1x8xf32>,
    return
  }
  func.func @transform_0(%arg0: i32) -> (i32, i32) {
    %c0_i32 = arith.constant 0 : i32
    %c0_i32_0 = arith.constant 0 : i32
    return %arg0, %c0_i32 : i32, i32
  }
  func.func @transform_1(%arg0: i32) -> (i32, i32) {
    %c0_i32 = arith.constant 0 : i32
    %c0_i32_0 = arith.constant 0 : i32
    %c0_i32_1 = arith.constant 0 : i32
    return %c0_i32, %c0_i32_0 : i32, i32
  }
  func.func @transform_2(%arg0: i32) -> (i32, i32) {
    %c0_i32 = arith.constant 0 : i32
    %c0_i32_0 = arith.constant 0 : i32
    %c0_i32_1 = arith.constant 0 : i32
    return %c0_i32, %c0_i32_0 : i32, i32
  }
  func.func @transform_3(%arg0: i32) -> (i32, i32) {
    %c0_i32 = arith.constant 0 : i32
    %c0_i32_0 = arith.constant 0 : i32
    %c0_i32_1 = arith.constant 0 : i32
    return %c0_i32, %c0_i32_0 : i32, i32
  }
  func.func @transform_4(%arg0: i32) -> (i32, i32) {
    %c0_i32 = arith.constant 0 : i32
    %c0_i32_0 = arith.constant 0 : i32
    %c0_i32_1 = arith.constant 0 : i32
    return %c0_i32, %c0_i32_0 : i32, i32
  }
  func.func @transform_5(%arg0: i32) -> (i32, i32) {
    %c0_i32 = arith.constant 0 : i32
    %c0_i32_0 = arith.constant 0 : i32
    %c0_i32_1 = arith.constant 0 : i32
    return %c0_i32, %c0_i32_0 : i32, i32
  }
  func.func @transform_6(%arg0: i32) -> (i32, i32) {
    %c0_i32 = arith.constant 0 : i32
    %c0_i32_0 = arith.constant 0 : i32
    %c0_i32_1 = arith.constant 0 : i32
    return %c0_i32, %c0_i32_0 : i32, i32
  }
  func.func @transform_7(%arg0: i32) -> (i32, i32) {
    %c0_i32 = arith.constant 0 : i32
    %c0_i32_0 = arith.constant 0 : i32
    %c0_i32_1 = arith.constant 0 : i32
    return %c0_i32, %c0_i32_0 : i32, i32
  }
  func.func @transform_8(%arg0: i32) -> (i32, i32) {
    %c0_i32 = arith.constant 0 : i32
    %c0_i32_0 = arith.constant 0 : i32
    %c0_i32_1 = arith.constant 0 : i32
    return %c0_i32, %c0_i32_0 : i32, i32
  }
  func.func @transform_9(%arg0: i32) -> (i32, i32) {
    %c0_i32 = arith.constant 0 : i32
    %c0_i32_0 = arith.constant 0 : i32
    %c0_i32_1 = arith.constant 0 : i32
    return %c0_i32, %c0_i32_0 : i32, i32
  }
  func.func @transform_10(%arg0: i32) -> (i32, i32) {
    %c0_i32 = arith.constant 0 : i32
    %c0_i32_0 = arith.constant 0 : i32
    return %c0_i32, %arg0 : i32, i32
  }
}

</mosaic_0001>

<llo_original>
// kernel: tpu_custom_call.1
$region0: #{tpu_custom_call.1}
  #allocation0 [shape = 'u32[]', space=smem, size = 0x4, offset = 0x4, fixed_abs, tag = 'smem constant byte address 0x4 - core index']
  #allocation1 [shape = 'u32[144,128]{1,0:T(1,128)}', space=vmem, size = 0x12000, scoped, tag = 'internal scratch']
  #allocation2 [shape = 'f32[1,1]{1,0:T(1,128)S(1)}', space=vmem, size = 0x200, scoped, tag = 'scoped memory for tpu_custom_call.1']
  %s0 = inlined_call_operand.hbm [shape: bf16[8,128], index: 0, kind: input, shape index: {}]
  %s1 = inlined_call_operand.hbm [shape: bf16[128,128], index: 1, kind: input, shape index: {}]
  %s2 = inlined_call_operand.vmem [shape: f32[1,128], index: 2, kind: input, shape index: {}]
  %s3 = inlined_call_operand.hbm [shape: bf16[128,128], index: 3, kind: input, shape index: {}]
  %s4 = inlined_call_operand.vmem [shape: f32[1,128], index: 4, kind: input, shape index: {}]
  %s5 = inlined_call_operand.hbm [shape: bf16[128,128], index: 5, kind: input, shape index: {}]
  %s6 = inlined_call_operand.hbm [shape: bf16[128,128], index: 6, kind: input, shape index: {}]
  %s7 = inlined_call_operand.vmem [shape: f32[1,128], index: 7, kind: input, shape index: {}]
  %s8 = inlined_call_operand.vmem [shape: f32[1,128], index: 8, kind: input, shape index: {}]
  %s9 = inlined_call_operand.<no memory space> [shape: f32[1,1], index: 9, kind: input, shape index: {}]
  %s10 = inlined_call_operand.hbm [shape: f32[1,8], index: 10, kind: output, shape index: {}]
  %s11 = sld [smem:[#allocation0]]
  $region70: #{tpu_custom_call.1} parent=0
    _
  %s13 = ssub.s32 1, %s11
  %s14 = scalar_select 0, %s13, %s11
  %v15 = vstv %s9
  %16 = vst [vmem:[#allocation2] sm:$0x1] %v15
  $region1: #{tpu_custom_call.1} parent=0
    #allocation3 [shape = 'u8[2048]{0}', space=vmem, size = 0x800, scoped, tag = 'input window, operand 0, single buffered']
    #allocation4 [shape = 's32[1]{0}', space=sflag, size = 0x4, scoped, tag = 'scoped memory for tpu_custom_call.1']
    #allocation5 [shape = 's32[1]{0}', space=sflag, size = 0x4, scoped, tag = 'scoped memory for tpu_custom_call.1']
    #allocation6 [shape = 'u8[32768]{0}', space=vmem, size = 0x8000, scoped, tag = 'input window, operand 1, single buffered']
    #allocation7 [shape = 's32[1]{0}', space=sflag, size = 0x4, scoped, tag = 'scoped memory for tpu_custom_call.1']
    #allocation8 [shape = 'u8[32768]{0}', space=vmem, size = 0x8000, scoped, tag = 'input window, operand 3, single buffered']
    #allocation9 [shape = 'u8[32768]{0}', space=vmem, size = 0x8000, scoped, tag = 'input window, operand 5, single buffered']
    #allocation10 [shape = 's32[1]{0}', space=sflag, size = 0x4, scoped, tag = 'scoped memory for tpu_custom_call.1']
    #allocation11 [shape = 'u8[32768]{0}', space=vmem, size = 0x8000, scoped, tag = 'input window, operand 6, single buffered']
    #allocation12 [shape = 'u8[512]{0}', space=vmem, size = 0x400, scoped, tag = 'output window, operand 0, single buffered']
    %17 = vsyncpa [#allocation4], 0
    %18 = vsyncpa [#allocation7], 0
    %19 = vsyncpa [#allocation10], 0
    %20 = vsyncpa [#allocation5], 0
    // Predicated region
    $region2: #{tpu_custom_call.1} parent=1 // pred_check
      _
    $region3: #{tpu_custom_call.1} parent=1 // pred_check_branch
      %22 = sbr.rel (0) target = $region5
    $region4: #{tpu_custom_call.1} parent=1 // pred_region
      %s24 = ssub.s32 64, 64
      %25 = vsyncadd [#allocation4], %s24
      %s27 = sshll.u32 [#allocation3], 4
      %s28 = int_to_ptr.vmem [resolvable:$true] %s27
      %30 = dma.hbm_to_vmem [thread:$0]  %s0, 64, %s28, [#allocation4]
    $region5: #{tpu_custom_call.1} parent=1 // pred_fallthru
      _
    // Predicated region
    $region6: #{tpu_custom_call.1} parent=1 // pred_check
      _
    $region7: #{tpu_custom_call.1} parent=1 // pred_check_branch
      %32 = sbr.rel (0) target = $region9
    $region8: #{tpu_custom_call.1} parent=1 // pred_region
      %s34 = ssub.s32 1024, 1024
      %35 = vsyncadd [#allocation7], %s34
      %s36 = sshll.u32 [#allocation6], 4
      %s37 = int_to_ptr.vmem [resolvable:$true] %s36
      %42 = dma.hbm_to_vmem [thread:$0]  %s1, 1024, %s37, [#allocation7], 64, 64, 4
    $region9: #{tpu_custom_call.1} parent=1 // pred_fallthru
      _
    // Predicated region
    $region10: #{tpu_custom_call.1} parent=1 // pred_check
      _
    $region11: #{tpu_custom_call.1} parent=1 // pred_check_branch
      %44 = sbr.rel (0) target = $region13
    $region12: #{tpu_custom_call.1} parent=1 // pred_region
      _
    $region13: #{tpu_custom_call.1} parent=1 // pred_fallthru
      _
    // Predicated region
    $region14: #{tpu_custom_call.1} parent=1 // pred_check
      _
    $region15: #{tpu_custom_call.1} parent=1 // pred_check_branch
      %46 = sbr.rel (0) target = $region17
    $region16: #{tpu_custom_call.1} parent=1 // pred_region
      %s48 = ssub.s32 1024, 1024
      %49 = vsyncadd [#allocation7], %s48
      %s50 = sshll.u32 [#allocation8], 4
      %s51 = int_to_ptr.vmem [resolvable:$true] %s50
      %56 = dma.hbm_to_vmem [thread:$0]  %s3, 1024, %s51, [#allocation7], 64, 64, 4
    $region17: #{tpu_custom_call.1} parent=1 // pred_fallthru
      _
    // Predicated region
    $region18: #{tpu_custom_call.1} parent=1 // pred_check
      _
    $region19: #{tpu_custom_call.1} parent=1 // pred_check_branch
      %58 = sbr.rel (0) target = $region21
    $region20: #{tpu_custom_call.1} parent=1 // pred_region
      _
    $region21: #{tpu_custom_call.1} parent=1 // pred_fallthru
      _
    // Predicated region
    $region22: #{tpu_custom_call.1} parent=1 // pred_check
      _
    $region23: #{tpu_custom_call.1} parent=1 // pred_check_branch
      %60 = sbr.rel (0) target = $region25
    $region24: #{tpu_custom_call.1} parent=1 // pred_region
      %s62 = ssub.s32 1024, 1024
      %63 = vsyncadd [#allocation10], %s62
      %s64 = sshll.u32 [#allocation9], 4
      %s65 = int_to_ptr.vmem [resolvable:$true] %s64
      %70 = dma.hbm_to_vmem [thread:$0]  %s5, 1024, %s65, [#allocation10], 64, 64, 4
    $region25: #{tpu_custom_call.1} parent=1 // pred_fallthru
      _
    // Predicated region
    $region26: #{tpu_custom_call.1} parent=1 // pred_check
      _
    $region27: #{tpu_custom_call.1} parent=1 // pred_check_branch
      %72 = sbr.rel (0) target = $region29
    $region28: #{tpu_custom_call.1} parent=1 // pred_region
      %s74 = ssub.s32 1024, 1024
      %75 = vsyncadd [#allocation10], %s74
      %s76 = sshll.u32 [#allocation11], 4
      %s77 = int_to_ptr.vmem [resolvable:$true] %s76
      %82 = dma.hbm_to_vmem [thread:$0]  %s6, 1024, %s77, [#allocation10], 64, 64, 4
    $region29: #{tpu_custom_call.1} parent=1 // pred_fallthru
      _
    // Predicated region
    $region30: #{tpu_custom_call.1} parent=1 // pred_check
      _
    $region31: #{tpu_custom_call.1} parent=1 // pred_check_branch
      %84 = sbr.rel (0) target = $region33
    $region32: #{tpu_custom_call.1} parent=1 // pred_region
      _
    $region33: #{tpu_custom_call.1} parent=1 // pred_fallthru
      _
    // Predicated region
    $region34: #{tpu_custom_call.1} parent=1 // pred_check
      _
    $region35: #{tpu_custom_call.1} parent=1 // pred_check_branch
      %86 = sbr.rel (0) target = $region37
    $region36: #{tpu_custom_call.1} parent=1 // pred_region
      _
    $region37: #{tpu_custom_call.1} parent=1 // pred_fallthru
      _
    // Predicated region
    $region38: #{tpu_custom_call.1} parent=1 // pred_check
      _
    $region39: #{tpu_custom_call.1} parent=1 // pred_check_branch
      %88 = sbr.rel (0) target = $region41
    $region40: #{tpu_custom_call.1} parent=1 // pred_region
      _
    $region41: #{tpu_custom_call.1} parent=1 // pred_fallthru
      _
    // Predicated region
    $region42: #{tpu_custom_call.1} parent=1 // pred_check
      _
    $region43: #{tpu_custom_call.1} parent=1 // pred_check_branch
      %90 = sbr.rel (0) target = $region45
    $region44: #{tpu_custom_call.1} parent=1 // pred_region
      %91 = dma.done [#allocation4], 64
    $region45: #{tpu_custom_call.1} parent=1 // pred_fallthru
      _
    // Predicated region
    $region46: #{tpu_custom_call.1} parent=1 // pred_check
      _
    $region47: #{tpu_custom_call.1} parent=1 // pred_check_branch
      %93 = sbr.rel (0) target = $region49
    $region48: #{tpu_custom_call.1} parent=1 // pred_region
      %94 = dma.done [#allocation7], 1024
    $region49: #{tpu_custom_call.1} parent=1 // pred_fallthru
      _
    // Predicated region
    $region50: #{tpu_custom_call.1} parent=1 // pred_check
      _
    $region51: #{tpu_custom_call.1} parent=1 // pred_check_branch
      %96 = sbr.rel (0) target = $region53
    $region52: #{tpu_custom_call.1} parent=1 // pred_region
      %97 = dma.done [#allocation7], 1024
    $region53: #{tpu_custom_call.1} parent=1 // pred_fallthru
      _
    // Predicated region
    $region54: #{tpu_custom_call.1} parent=1 // pred_check
      _
    $region55: #{tpu_custom_call.1} parent=1 // pred_check_branch
      %99 = sbr.rel (0) target = $region57
    $region56: #{tpu_custom_call.1} parent=1 // pred_region
      %100 = dma.done [#allocation10], 1024
    $region57: #{tpu_custom_call.1} parent=1 // pred_fallthru
      _
    // Predicated region
    $region58: #{tpu_custom_call.1} parent=1 // pred_check
      _
    $region59: #{tpu_custom_call.1} parent=1 // pred_check_branch
      %102 = sbr.rel (0) target = $region61
    $region60: #{tpu_custom_call.1} parent=1 // pred_region
      %103 = dma.done [#allocation10], 1024
    $region61: #{tpu_custom_call.1} parent=1 // pred_fallthru
      _
    %v105 = vld [vmem:[#allocation3] sm:$0xf]
    %v106 = vld [vmem:[#allocation6] sm:$0xf]
    %v107 = vld [vmem:[#allocation6 + $0x4] sm:$0xf]
    %v108 = vld [vmem:[#allocation6 + $0x8] sm:$0xf]
    %v109 = vld [vmem:[#allocation6 + $0xc] sm:$0xf]
    %v110 = vld [vmem:[#allocation6 + $0x10] sm:$0xf]
    %v111 = vld [vmem:[#allocation6 + $0x14] sm:$0xf]
    %v112 = vld [vmem:[#allocation6 + $0x18] sm:$0xf]
    %v113 = vld [vmem:[#allocation6 + $0x1c] sm:$0xf]
    %v114 = vld [vmem:[#allocation6 + $0x20] sm:$0xf]
    %v115 = vld [vmem:[#allocation6 + $0x24] sm:$0xf]
    %v116 = vld [vmem:[#allocation6 + $0x28] sm:$0xf]
    %v117 = vld [vmem:[#allocation6 + $0x2c] sm:$0xf]
    %v118 = vld [vmem:[#allocation6 + $0x30] sm:$0xf]
    %v119 = vld [vmem:[#allocation6 + $0x34] sm:$0xf]
    %v120 = vld [vmem:[#allocation6 + $0x38] sm:$0xf]
    %v121 = vld [vmem:[#allocation6 + $0x3c] sm:$0xf]
    %v122 = vld [vmem:[%s2] sm:$0x1]
    %v124 = vlaneseq
    %v125 = vshrl.u32 %v124, 7
    %v126 = vsub.s32 0, %v125
    %v127 = vrot.slane %v122, %v126
    %v145 = vunpack.c.l.b16 %v106
    %v146 = vunpack.c.l.b16 %v107
    %v147 = vunpack.c.l.b16 %v108
    %v148 = vunpack.c.l.b16 %v109
    %v149 = vunpack.c.l.b16 %v110
    %v150 = vunpack.c.l.b16 %v111
    %v151 = vunpack.c.l.b16 %v112
    %v152 = vunpack.c.l.b16 %v113
    %v153 = vunpack.c.l.b16 %v114
    %v154 = vunpack.c.l.b16 %v115
    %v155 = vunpack.c.l.b16 %v116
    %v156 = vunpack.c.l.b16 %v117
    %v157 = vunpack.c.l.b16 %v118
    %v158 = vunpack.c.l.b16 %v119
    %v159 = vunpack.c.l.b16 %v120
    %v160 = vunpack.c.l.b16 %v121
    %v161 = vpack.c.b16 %v146, %v145
    %v162 = vpack.c.b16 %v148, %v147
    %v163 = vpack.c.b16 %v150, %v149
    %v164 = vpack.c.b16 %v152, %v151
    %v165 = vpack.c.b16 %v154, %v153
    %v166 = vpack.c.b16 %v156, %v155
    %v167 = vpack.c.b16 %v158, %v157
    %v168 = vpack.c.b16 %v160, %v159
    %177 = vmatprep.subr.bf16.mxu0 0
    %178 = vmatpush1.bf16.msra.mxu0 %v161
    %179 = vmatprep.subr.bf16.mxu0 0
    %180 = vmatpush1.bf16.msra.mxu0 %v162
    %181 = vmatprep.subr.bf16.mxu0 0
    %182 = vmatpush1.bf16.msra.mxu0 %v163
    %183 = vmatprep.subr.bf16.mxu0 0
    %184 = vmatpush1.bf16.msra.mxu0 %v164
    %185 = vmatprep.subr.bf16.mxu0 0
    %186 = vmatpush1.bf16.msra.mxu0 %v165
    %187 = vmatprep.subr.bf16.mxu0 0
    %188 = vmatpush1.bf16.msra.mxu0 %v166
    %189 = vmatprep.subr.bf16.mxu0 0
    %190 = vmatpush1.bf16.msra.mxu0 %v167
    %191 = vmatprep.subr.bf16.mxu0 0
    %192 = vmatpush1.bf16.msra.mxu0 %v168
    %193 = vmatprep.subr.bf16.mxu0 0
    %194 = vmatpush1.bf16.msra.mxu0 0
    %195 = vmatprep.subr.bf16.mxu0 0
    %196 = vmatpush1.bf16.msra.mxu0 0
    %197 = vmatprep.subr.bf16.mxu0 0
    %198 = vmatpush1.bf16.msra.mxu0 0
    %199 = vmatprep.subr.bf16.mxu0 0
    %200 = vmatpush1.bf16.msra.mxu0 0
    %201 = vmatprep.subr.bf16.mxu0 0
    %202 = vmatpush1.bf16.msra.mxu0 0
    %203 = vmatprep.subr.bf16.mxu0 0
    %204 = vmatpush1.bf16.msra.mxu0 0
    %205 = vmatprep.subr.bf16.mxu0 0
    %206 = vmatpush1.bf16.msra.mxu0 0
    %207 = vmatprep.subr.bf16.mxu0 0
    %208 = vmatpush1.bf16.msra.mxu0 0
    %209 = vmatprep.mubr.bf16.mxu0 0
    %210 = vmatmul.mubr.bf16.gmra.mrb[0].mxu0 %v105
    %v211 = vpop.f32.mrb[0].mxu0
    %v212 = vadd.f32 %v127, %v211
    %v213 = vpop.f32.mrb[0].mxu0
    %v214 = vpop.f32.mrb[0].mxu0
    %v215 = vpop.f32.mrb[0].mxu0
    %216 = vdwg.mxu0
    %v217 = vmax.f32 %v212, 0.0
    %v218 = vpack.c.bf16 %v217, %v217
    %v219 = vld [vmem:[#allocation8] sm:$0xf]
    %v220 = vld [vmem:[#allocation8 + $0x4] sm:$0xf]
    %v221 = vld [vmem:[#allocation8 + $0x8] sm:$0xf]
    %v222 = vld [vmem:[#allocation8 + $0xc] sm:$0xf]
    %v223 = vld [vmem:[#allocation8 + $0x10] sm:$0xf]
    %v224 = vld [vmem:[#allocation8 + $0x14] sm:$0xf]
    %v225 = vld [vmem:[#allocation8 + $0x18] sm:$0xf]
    %v226 = vld [vmem:[#allocation8 + $0x1c] sm:$0xf]
    %v227 = vld [vmem:[#allocation8 + $0x20] sm:$0xf]
    %v228 = vld [vmem:[#allocation8 + $0x24] sm:$0xf]
    %v229 = vld [vmem:[#allocation8 + $0x28] sm:$0xf]
    %v230 = vld [vmem:[#allocation8 + $0x2c] sm:$0xf]
    %v231 = vld [vmem:[#allocation8 + $0x30] sm:$0xf]
    %v232 = vld [vmem:[#allocation8 + $0x34] sm:$0xf]
    %v233 = vld [vmem:[#allocation8 + $0x38] sm:$0xf]
    %v234 = vld [vmem:[#allocation8 + $0x3c] sm:$0xf]
    %v235 = vld [vmem:[%s4] sm:$0x1]
    %v237 = vlaneseq
    %v238 = vshrl.u32 %v237, 7
    %v239 = vsub.s32 0, %v238
    %v240 = vrot.slane %v235, %v239
    %v258 = vunpack.c.l.b16 %v219
    %v259 = vunpack.c.l.b16 %v220
    %v260 = vunpack.c.l.b16 %v221
    %v261 = vunpack.c.l.b16 %v222
    %v262 = vunpack.c.l.b16 %v223
    %v263 = vunpack.c.l.b16 %v224
    %v264 = vunpack.c.l.b16 %v225
    %v265 = vunpack.c.l.b16 %v226
    %v266 = vunpack.c.l.b16 %v227
    %v267 = vunpack.c.l.b16 %v228
    %v268 = vunpack.c.l.b16 %v229
    %v269 = vunpack.c.l.b16 %v230
    %v270 = vunpack.c.l.b16 %v231
    %v271 = vunpack.c.l.b16 %v232
    %v272 = vunpack.c.l.b16 %v233
    %v273 = vunpack.c.l.b16 %v234
    %v274 = vpack.c.b16 %v259, %v258
    %v275 = vpack.c.b16 %v261, %v260
    %v276 = vpack.c.b16 %v263, %v262
    %v277 = vpack.c.b16 %v265, %v264
    %v278 = vpack.c.b16 %v267, %v266
    %v279 = vpack.c.b16 %v269, %v268
    %v280 = vpack.c.b16 %v271, %v270
    %v281 = vpack.c.b16 %v273, %v272
    %290 = vmatprep.subr.bf16.mxu0 0
    %291 = vmatpush1.bf16.msra.mxu0 %v274
    %292 = vmatprep.subr.bf16.mxu0 0
    %293 = vmatpush1.bf16.msra.mxu0 %v275
    %294 = vmatprep.subr.bf16.mxu0 0
    %295 = vmatpush1.bf16.msra.mxu0 %v276
    %296 = vmatprep.subr.bf16.mxu0 0
    %297 = vmatpush1.bf16.msra.mxu0 %v277
    %298 = vmatprep.subr.bf16.mxu0 0
    %299 = vmatpush1.bf16.msra.mxu0 %v278
    %300 = vmatprep.subr.bf16.mxu0 0
    %301 = vmatpush1.bf16.msra.mxu0 %v279
    %302 = vmatprep.subr.bf16.mxu0 0
    %303 = vmatpush1.bf16.msra.mxu0 %v280
    %304 = vmatprep.subr.bf16.mxu0 0
    %305 = vmatpush1.bf16.msra.mxu0 %v281
    %306 = vmatprep.subr.bf16.mxu0 0
    %307 = vmatpush1.bf16.msra.mxu0 0
    %308 = vmatprep.subr.bf16.mxu0 0
    %309 = vmatpush1.bf16.msra.mxu0 0
    %310 = vmatprep.subr.bf16.mxu0 0
    %311 = vmatpush1.bf16.msra.mxu0 0
    %312 = vmatprep.subr.bf16.mxu0 0
    %313 = vmatpush1.bf16.msra.mxu0 0
    %314 = vmatprep.subr.bf16.mxu0 0
    %315 = vmatpush1.bf16.msra.mxu0 0
    %316 = vmatprep.subr.bf16.mxu0 0
    %317 = vmatpush1.bf16.msra.mxu0 0
    %318 = vmatprep.subr.bf16.mxu0 0
    %319 = vmatpush1.bf16.msra.mxu0 0
    %320 = vmatprep.subr.bf16.mxu0 0
    %321 = vmatpush1.bf16.msra.mxu0 0
    %322 = vmatprep.mubr.bf16.mxu0 0
    %323 = vmatmul.mubr.bf16.gmra.mrb[0].mxu0 %v218
    %v324 = vpop.f32.mrb[0].mxu0
    %v325 = vadd.f32 %v240, %v324
    %v326 = vpop.f32.mrb[0].mxu0
    %v327 = vpop.f32.mrb[0].mxu0
    %v328 = vpop.f32.mrb[0].mxu0
    %329 = vdwg.mxu0
    %v330 = vmax.f32 %v325, 0.0
    %v331 = vpack.c.bf16 %v330, %v330
    %v332 = vld [vmem:[#allocation9] sm:$0xf]
    %v333 = vld [vmem:[#allocation9 + $0x4] sm:$0xf]
    %v334 = vld [vmem:[#allocation9 + $0x8] sm:$0xf]
    %v335 = vld [vmem:[#allocation9 + $0xc] sm:$0xf]
    %v336 = vld [vmem:[#allocation9 + $0x10] sm:$0xf]
    %v337 = vld [vmem:[#allocation9 + $0x14] sm:$0xf]
    %v338 = vld [vmem:[#allocation9 + $0x18] sm:$0xf]
    %v339 = vld [vmem:[#allocation9 + $0x1c] sm:$0xf]
    %v340 = vld [vmem:[#allocation9 + $0x20] sm:$0xf]
    %v341 = vld [vmem:[#allocation9 + $0x24] sm:$0xf]
    %v342 = vld [vmem:[#allocation9 + $0x28] sm:$0xf]
    %v343 = vld [vmem:[#allocation9 + $0x2c] sm:$0xf]
    %v344 = vld [vmem:[#allocation9 + $0x30] sm:$0xf]
    %v345 = vld [vmem:[#allocation9 + $0x34] sm:$0xf]
    %v346 = vld [vmem:[#allocation9 + $0x38] sm:$0xf]
    %v347 = vld [vmem:[#allocation9 + $0x3c] sm:$0xf]
    %v348 = vld [vmem:[#allocation11] sm:$0xf]
    %v349 = vld [vmem:[#allocation11 + $0x4] sm:$0xf]
    %v350 = vld [vmem:[#allocation11 + $0x8] sm:$0xf]
    %v351 = vld [vmem:[#allocation11 + $0xc] sm:$0xf]
    %v352 = vld [vmem:[#allocation11 + $0x10] sm:$0xf]
    %v353 = vld [vmem:[#allocation11 + $0x14] sm:$0xf]
    %v354 = vld [vmem:[#allocation11 + $0x18] sm:$0xf]
    %v355 = vld [vmem:[#allocation11 + $0x1c] sm:$0xf]
    %v356 = vld [vmem:[#allocation11 + $0x20] sm:$0xf]
    %v357 = vld [vmem:[#allocation11 + $0x24] sm:$0xf]
    %v358 = vld [vmem:[#allocation11 + $0x28] sm:$0xf]
    %v359 = vld [vmem:[#allocation11 + $0x2c] sm:$0xf]
    %v360 = vld [vmem:[#allocation11 + $0x30] sm:$0xf]
    %v361 = vld [vmem:[#allocation11 + $0x34] sm:$0xf]
    %v362 = vld [vmem:[#allocation11 + $0x38] sm:$0xf]
    %v363 = vld [vmem:[#allocation11 + $0x3c] sm:$0xf]
    %v380 = vunpack.c.l.b16 %v348
    %v381 = vunpack.c.l.b16 %v349
    %v382 = vunpack.c.l.b16 %v350
    %v383 = vunpack.c.l.b16 %v351
    %v384 = vunpack.c.l.b16 %v352
    %v385 = vunpack.c.l.b16 %v353
    %v386 = vunpack.c.l.b16 %v354
    %v387 = vunpack.c.l.b16 %v355
    %v388 = vunpack.c.l.b16 %v356
    %v389 = vunpack.c.l.b16 %v357
    %v390 = vunpack.c.l.b16 %v358
    %v391 = vunpack.c.l.b16 %v359
    %v392 = vunpack.c.l.b16 %v360
    %v393 = vunpack.c.l.b16 %v361
    %v394 = vunpack.c.l.b16 %v362
    %v395 = vunpack.c.l.b16 %v363
    %v396 = vpack.c.b16 %v381, %v380
    %v397 = vpack.c.b16 %v383, %v382
    %v398 = vpack.c.b16 %v385, %v384
    %v399 = vpack.c.b16 %v387, %v386
    %v400 = vpack.c.b16 %v389, %v388
    %v401 = vpack.c.b16 %v391, %v390
    %v402 = vpack.c.b16 %v393, %v392
    %v403 = vpack.c.b16 %v395, %v394
    %412 = vmatprep.subr.bf16.mxu0 0
    %413 = vmatpush1.bf16.msra.mxu0 %v396
    %414 = vmatprep.subr.bf16.mxu0 0
    %415 = vmatpush1.bf16.msra.mxu0 %v397
    %416 = vmatprep.subr.bf16.mxu0 0
    %417 = vmatpush1.bf16.msra.mxu0 %v398
    %418 = vmatprep.subr.bf16.mxu0 0
    %419 = vmatpush1.bf16.msra.mxu0 %v399
    %420 = vmatprep.subr.bf16.mxu0 0
    %421 = vmatpush1.bf16.msra.mxu0 %v400
    %422 = vmatprep.subr.bf16.mxu0 0
    %423 = vmatpush1.bf16.msra.mxu0 %v401
    %424 = vmatprep.subr.bf16.mxu0 0
    %425 = vmatpush1.bf16.msra.mxu0 %v402
    %426 = vmatprep.subr.bf16.mxu0 0
    %427 = vmatpush1.bf16.msra.mxu0 %v403
    %428 = vmatprep.subr.bf16.mxu0 0
    %429 = vmatpush1.bf16.msra.mxu0 0
    %430 = vmatprep.subr.bf16.mxu0 0
    %431 = vmatpush1.bf16.msra.mxu0 0
    %432 = vmatprep.subr.bf16.mxu0 0
    %433 = vmatpush1.bf16.msra.mxu0 0
    %434 = vmatprep.subr.bf16.mxu0 0
    %435 = vmatpush1.bf16.msra.mxu0 0
    %436 = vmatprep.subr.bf16.mxu0 0
    %437 = vmatpush1.bf16.msra.mxu0 0
    %438 = vmatprep.subr.bf16.mxu0 0
    %439 = vmatpush1.bf16.msra.mxu0 0
    %440 = vmatprep.subr.bf16.mxu0 0
    %441 = vmatpush1.bf16.msra.mxu0 0
    %442 = vmatprep.subr.bf16.mxu0 0
    %443 = vmatpush1.bf16.msra.mxu0 0
    %444 = vmatprep.mubr.bf16.mxu0 0
    %445 = vmatmul.mubr.bf16.gmra.mrb[0].mxu0 %v105
    %v446 = vpop.f32.mrb[0].mxu0
    %v447 = vadd.f32 0.0, %v446
    %v448 = vpop.f32.mrb[0].mxu0
    %v449 = vpop.f32.mrb[0].mxu0
    %v450 = vpop.f32.mrb[0].mxu0
    %451 = vdwg.mxu0
    %v468 = vunpack.c.l.b16 %v332
    %v469 = vunpack.c.l.b16 %v333
    %v470 = vunpack.c.l.b16 %v334
    %v471 = vunpack.c.l.b16 %v335
    %v472 = vunpack.c.l.b16 %v336
    %v473 = vunpack.c.l.b16 %v337
    %v474 = vunpack.c.l.b16 %v338
    %v475 = vunpack.c.l.b16 %v339
    %v476 = vunpack.c.l.b16 %v340
    %v477 = vunpack.c.l.b16 %v341
    %v478 = vunpack.c.l.b16 %v342
    %v479 = vunpack.c.l.b16 %v343
    %v480 = vunpack.c.l.b16 %v344
    %v481 = vunpack.c.l.b16 %v345
    %v482 = vunpack.c.l.b16 %v346
    %v483 = vunpack.c.l.b16 %v347
    %v484 = vpack.c.b16 %v469, %v468
    %v485 = vpack.c.b16 %v471, %v470
    %v486 = vpack.c.b16 %v473, %v472
    %v487 = vpack.c.b16 %v475, %v474
    %v488 = vpack.c.b16 %v477, %v476
    %v489 = vpack.c.b16 %v479, %v478
    %v490 = vpack.c.b16 %v481, %v480
    %v491 = vpack.c.b16 %v483, %v482
    %500 = vmatprep.subr.bf16.mxu0 0
    %501 = vmatpush1.bf16.msra.mxu0 %v484
    %502 = vmatprep.subr.bf16.mxu0 0
    %503 = vmatpush1.bf16.msra.mxu0 %v485
    %504 = vmatprep.subr.bf16.mxu0 0
    %505 = vmatpush1.bf16.msra.mxu0 %v486
    %506 = vmatprep.subr.bf16.mxu0 0
    %507 = vmatpush1.bf16.msra.mxu0 %v487
    %508 = vmatprep.subr.bf16.mxu0 0
    %509 = vmatpush1.bf16.msra.mxu0 %v488
    %510 = vmatprep.subr.bf16.mxu0 0
    %511 = vmatpush1.bf16.msra.mxu0 %v489
    %512 = vmatprep.subr.bf16.mxu0 0
    %513 = vmatpush1.bf16.msra.mxu0 %v490
    %514 = vmatprep.subr.bf16.mxu0 0
    %515 = vmatpush1.bf16.msra.mxu0 %v491
    %516 = vmatprep.subr.bf16.mxu0 0
    %517 = vmatpush1.bf16.msra.mxu0 0
    %518 = vmatprep.subr.bf16.mxu0 0
    %519 = vmatpush1.bf16.msra.mxu0 0
    %520 = vmatprep.subr.bf16.mxu0 0
    %521 = vmatpush1.bf16.msra.mxu0 0
    %522 = vmatprep.subr.bf16.mxu0 0
    %523 = vmatpush1.bf16.msra.mxu0 0
    %524 = vmatprep.subr.bf16.mxu0 0
    %525 = vmatpush1.bf16.msra.mxu0 0
    %526 = vmatprep.subr.bf16.mxu0 0
    %527 = vmatpush1.bf16.msra.mxu0 0
    %528 = vmatprep.subr.bf16.mxu0 0
    %529 = vmatpush1.bf16.msra.mxu0 0
    %530 = vmatprep.subr.bf16.mxu0 0
    %531 = vmatpush1.bf16.msra.mxu0 0
    %532 = vmatprep.mubr.bf16.mxu0 0
    %533 = vmatmul.mubr.bf16.gmra.mrb[0].mxu0 %v331
    %v534 = vpop.f32.mrb[0].mxu0
    %v535 = vadd.f32 %v447, %v534
    %v536 = vpop.f32.mrb[0].mxu0
    %v537 = vpop.f32.mrb[0].mxu0
    %v538 = vpop.f32.mrb[0].mxu0
    %539 = vdwg.mxu0
    %v540 = vld [vmem:[%s7] sm:$0x1]
    %v542 = vlaneseq
    %v543 = vshrl.u32 %v542, 7
    %v544 = vsub.s32 0, %v543
    %v545 = vrot.slane %v540, %v544
    %v547 = vadd.f32 %v535, %v545
    %v548 = vmax.f32 %v547, 0.0
    %v549 = vld [vmem:[%s8] sm:$0x1]
    %v551 = vlaneseq
    %v552 = vshrl.u32 %v551, 7
    %v553 = vsub.s32 0, %v552
    %v554 = vrot.slane %v549, %v553
    %v556 = vmul.f32 %v548, %v554
    %557 = vadd.xlane.f32.xlu0 %v556
    %v558 = vpop.xlane.xlu0 %557
    %v559 = vld [vmem:[#allocation2] sm:$0x1]
    %561 = vset.pattern.permute.xlu0 0
    %562 = vperm.xlu0 %561, %v559
    %v563 = vpop.permute.xlu0 %562
    %v565 = vlaneseq
    %v566 = vshrl.u32 %v565, 7
    %v567 = vsub.s32 0, %v566
    %v568 = vrot.slane %v563, %v567
    %v569 = vadd.f32 %v558, %v568
    %v571 = vlaneseq
    %v572 = vand.u32 %v571, 127
    %v573 = vlaneseq
    %v574 = vshrl.u32 %v573, 7
    %v575 = vsub.s32 %v572, %v574
    %v576 = vrot.slane %v569, %v575
    %vm578 = vcmask 57344
    %579 = vst.msk [vmem:[#allocation12] sm:$0x1] %vm578, %v576
    // Predicated region
    $region62: #{tpu_custom_call.1} parent=1 // pred_check
      _
    $region63: #{tpu_custom_call.1} parent=1 // pred_check_branch
      %581 = sbr.rel (0) target = $region65
    $region64: #{tpu_custom_call.1} parent=1 // pred_region
      %s583 = ssub.s32 16, 16
      %584 = vsyncadd [#allocation5], %s583
      %s586 = sshll.u32 [#allocation12], 4
      %s587 = int_to_ptr.vmem [resolvable:$true] %s586
      %589 = dma.vmem_to_hbm [thread:$0]  %s587, 16, %s10, [#allocation5]
    $region65: #{tpu_custom_call.1} parent=1 // pred_fallthru
      _
    // Predicated region
    $region66: #{tpu_custom_call.1} parent=1 // pred_check
      _
    $region67: #{tpu_custom_call.1} parent=1 // pred_check_branch
      %591 = sbr.rel (0) target = $region69
    $region68: #{tpu_custom_call.1} parent=1 // pred_region
      %592 = dma.done [#allocation5], 16
    $region69: #{tpu_custom_call.1} parent=1 // pred_fallthru
      _
    %593 = vsyncpa [#allocation4], 1
    %594 = vsyncpa [#allocation7], 1
    %595 = vsyncpa [#allocation10], 1
    %596 = vsyncpa [#allocation5], 1

</llo_original>
